<compile_context>
chip_gen: v7x
topology: tpu7x:2x2x1
jax: 0.10.0
libtpu: 0.0.40
codegen_flags: <defaults>
</compile_context>

<pallas_src>
from typing import NamedTuple

import jax
import jax.numpy as jnp
from jax.experimental import pallas as pl
from jax.experimental.pallas import tpu as pltpu

_LANE = 128

# Per-generation (tm, tf) defaults.
_GEN_TILES = {
    "v7x": (384, 256),
    "v6e": (512, 256),
    "v5e": (256, 1024),
    "unknown": (256, 512),
}


def _round_up(a: int, b: int) -> int:
    return (a + b - 1) // b * b


def _cdiv(a: int, b: int) -> int:
    return -(-a // b)


def _chip_info():
    """Returns (generation str, physical VMEM bytes, multi_tensorcore bool)."""
    kind = ""
    try:
        kind = jax.devices()[0].device_kind.lower()
    except Exception:
        pass
    if "v7" in kind or "7x" in kind:
        gen = "v7x"
    elif "v6" in kind:
        gen = "v6e"
    elif "v5" in kind:
        gen = "v5e"
    else:
        gen = "unknown"
    vmem_cap = None
    try:
        vmem_cap = int(pltpu.get_tpu_info().vmem_capacity_bytes)
    except Exception:
        vmem_cap = None
    if vmem_cap is None:
        vmem_cap = (64 << 20) if gen == "v7x" else (128 << 20)
    multi_core = gen == "v7x"
    return gen, vmem_cap, multi_core


def _vmem_budget(vmem_cap: int) -> int:
    """Scoped-VMEM ceiling with headroom below physical."""
    return max(32 << 20, vmem_cap - (16 << 20))


def _footprint_bytes(tm, tf, dmp, cbytes, obytes, use_acc):
    """Estimated VMEM footprint (default double-buffering on all specs)."""
    x_b = 2 * tm * dmp * cbytes            # x tile
    w13_b = 2 * dmp * (2 * tf) * cbytes    # fused W1||W3 slab
    w2_b = 2 * tf * dmp * cbytes           # W2.T slab
    o_b = 2 * tm * dmp * obytes            # output tile
    acc_b = (tm * dmp * 4) if use_acc else 0
    return x_b + w13_b + w2_b + o_b + acc_b


def _pick_tf(tf, tm, d_model, dff, cbytes, budget):
    """Clamp/auto-shrink tf so the worst-case footprint fits the budget."""
    dmp = _round_up(d_model, _LANE)
    tf = max(_LANE, min(_round_up(tf, _LANE), _round_up(dff, _LANE)))
    tm = max(_LANE, _round_up(tm, _LANE))
    # Worst case: f32 output + f32 accumulator scratch.
    while tf > _LANE and _footprint_bytes(tm, tf, dmp, cbytes, 4, True) > budget:
        tf -= _LANE
    return tf


def _pick_tm(tm, tf, M, d_model, cbytes, obytes, use_acc, budget, multi_core):
    """Clamp/auto-shrink tm (tf is fixed by the prepared weight layout)."""
    dmp = _round_up(d_model, _LANE)
    tm = max(_LANE, min(_round_up(tm, _LANE), _round_up(M, _LANE)))
    if multi_core and M > _LANE:
        # Keep >= 2 M tiles so both v7x TensorCores get work (M axis is "parallel").
        tm = min(tm, max(_LANE, _round_up(_cdiv(M, 2), _LANE)))
    while tm > _LANE and _footprint_bytes(tm, tf, dmp, cbytes, obytes, use_acc) > budget:
        tm -= _LANE
    return tm


class SwiGLUWeights(NamedTuple):
    """Pre-padded / pre-transposed weight layout (built once, reused per call)."""
    w13: jax.Array   # (n_f, dmp, 2*tf): slab j = [W1.T cols j*tf:(j+1)*tf | W3.T cols ...]
    w2t: jax.Array   # (dfp, dmp):       W2.T, padded
    d_model: int
    dff: int
    dmp: int
    dfp: int
    tf: int


def prepare_swiglu_weights(w1, w2, w3, *, tf, compute_dtype=jnp.bfloat16):
    """One-time layout plumbing (transpose / pad / fuse).  Hoist out of the call path."""
    dff, d_model = w1.shape
    assert w3.shape == (dff, d_model)
    assert w2.shape == (d_model, dff)

    dmp = _round_up(d_model, _LANE)
    tf = max(_LANE, min(_round_up(tf, _LANE), _round_up(dff, _LANE)))
    dfp = _round_up(dff, tf)
    n_f = dfp // tf

    def pad_t(w):  # (dff, d_model) -> padded (dmp, dfp) transpose in compute dtype
        wt = w.T.astype(compute_dtype)
        if (d_model, dff) != (dmp, dfp):
            wt = jnp.zeros((dmp, dfp), compute_dtype).at[:d_model, :dff].set(wt)
        return wt

    w1t = pad_t(w1)
    w3t = pad_t(w3)
    # Fused gate/up weight, blocked along dff: one MXU matmul per dff step.
    w13 = jnp.concatenate(
        [w1t.reshape(dmp, n_f, tf).transpose(1, 0, 2),
         w3t.reshape(dmp, n_f, tf).transpose(1, 0, 2)],
        axis=-1)                                    # (n_f, dmp, 2*tf)

    w2t = w2.T.astype(compute_dtype)
    if (dff, d_model) != (dfp, dmp):
        w2t = jnp.zeros((dfp, dmp), compute_dtype).at[:dff, :d_model].set(
            w2.T.astype(compute_dtype))

    return SwiGLUWeights(w13, w2t, d_model, dff, dmp, dfp, tf)


def _make_kernel(n_f: int, direct_out: bool):
    """Builds the kernel body.  Grid = (m_tiles, dff_tiles); dff is a reduction."""

    def compute_d(x_ref, w13_ref, w2_ref):
        x = x_ref[...]                    # (tm, dmp)      bf16
        w13 = w13_ref[0]                  # (dmp, 2*tf)    bf16
        # One fused MXU matmul for the gate (W1) and up (W3) projections.
        h = jnp.dot(x, w13, preferred_element_type=jnp.float32)    # (tm, 2*tf) f32
        half = h.shape[-1] // 2
        h1 = h[:, :half]
        h3 = h[:, half:]
        # silu(h1) * h3 in f32 (VPU + EUP; v5e has no bf16 VPU/EUP path).
        g = (h1 * jax.nn.sigmoid(h1)) * h3
        # Down projection for this dff slab (f32 accumulation on the MXU).
        return jnp.dot(g.astype(w2_ref.dtype), w2_ref[...],
                       preferred_element_type=jnp.float32)          # (tm, dmp) f32

    if direct_out:
        # Output dtype is f32: accumulate straight into the resident output block
        # (no f32 scratch, no finalize copy).
        def kernel(x_ref, w13_ref, w2_ref, o_ref):
            d = compute_d(x_ref, w13_ref, w2_ref)
            if n_f == 1:
                o_ref[...] = d
            else:
                j = pl.program_id(1)

                @pl.when(j == 0)
                def _():
                    o_ref[...] = d

                @pl.when(j > 0)
                def _():
                    o_ref[...] += d
        return kernel

    # Non-f32 output: f32 VMEM accumulator, cast once on the last dff step.
    def kernel(x_ref, w13_ref, w2_ref, o_ref, acc_ref):
        d = compute_d(x_ref, w13_ref, w2_ref)
        if n_f == 1:
            o_ref[...] = d.astype(o_ref.dtype)
        else:
            j = pl.program_id(1)

            @pl.when(j == 0)
            def _():
                acc_ref[...] = d          # no zero-fill store

            @pl.when(jnp.logical_and(j > 0, j < n_f - 1))
            def _():
                acc_ref[...] += d

            @pl.when(j == n_f - 1)
            def _():
                # Skip the final acc store; fold the last partial sum directly.
                o_ref[...] = (acc_ref[...] + d).astype(o_ref.dtype)
    return kernel


def swiglu(x, w1=None, w2=None, w3=None, *, prepared=None, tm=None, tf=None,
           compute_dtype=jnp.bfloat16, vmem_limit_bytes=None):
    """SwiGLU forward: (silu(x @ W1.T) * (x @ W3.T)) @ W2.T.

    x: (..., d_model); w1, w3: (dff, d_model); w2: (d_model, dff).
    Pass `prepared=prepare_swiglu_weights(...)` (or use make_swiglu) to avoid
    rebuilding the weight layout every call.
    """
    gen, vmem_cap, multi_core = _chip_info()
    if vmem_limit_bytes is None:
        vmem_limit_bytes = _vmem_budget(vmem_cap)
    d_tm, d_tf = _GEN_TILES.get(gen, _GEN_TILES["unknown"])
    if tm is None:
        tm = d_tm
    if tf is None:
        tf = d_tf
    cbytes = jnp.dtype(compute_dtype).itemsize

    if prepared is None:
        dff_in, d_model_in = w1.shape
        tf = _pick_tf(tf, tm, d_model_in, dff_in, cbytes, vmem_limit_bytes)
        prepared = prepare_swiglu_weights(w1, w2, w3, tf=tf,
                                          compute_dtype=compute_dtype)

    d_model, dff = prepared.d_model, prepared.dff
    dmp, dfp, tf = prepared.dmp, prepared.dfp, prepared.tf
    n_f = dfp // tf

    orig_shape = x.shape
    assert orig_shape[-1] == d_model, (orig_shape, d_model)
    xm = x.reshape(-1, d_model)
    M = xm.shape[0]
    out_dtype = x.dtype
    direct_out = out_dtype == jnp.float32
    obytes = jnp.dtype(out_dtype).itemsize

    tm = _pick_tm(tm, tf, M, d_model, cbytes, obytes, not direct_out,
                  vmem_limit_bytes, multi_core)
    Mp = _round_up(M, tm)
    n_m = Mp // tm

    # Pad + cast x only when needed (static shapes -> Python-level branch).
    aligned = (Mp == M) and (dmp == d_model)
    if aligned:
        xp = xm.astype(compute_dtype)
    else:
        xp = jnp.zeros((Mp, dmp), compute_dtype).at[:M, :d_model].set(
            xm.astype(compute_dtype))

    kernel = _make_kernel(n_f, direct_out)
    scratch = [] if direct_out else [pltpu.VMEM((tm, dmp), jnp.float32)]

    out = pl.pallas_call(
        kernel,
        out_shape=jax.ShapeDtypeStruct((Mp, dmp), out_dtype),
        grid_spec=pltpu.PrefetchScalarGridSpec(
            num_scalar_prefetch=0,
            grid=(n_m, n_f),
            in_specs=[
                pl.BlockSpec((tm, dmp), lambda i, j: (i, 0)),            # x rows
                pl.BlockSpec((1, dmp, 2 * tf), lambda i, j: (j, 0, 0)),  # W1||W3 slab
                pl.BlockSpec((tf, dmp), lambda i, j: (j, 0)),            # W2.T slab
            ],
            out_specs=pl.BlockSpec((tm, dmp), lambda i, j: (i, 0)),
            scratch_shapes=scratch,
        ),
        compiler_params=pltpu.CompilerParams(
            dimension_semantics=("parallel", "arbitrary"),
            vmem_limit_bytes=vmem_limit_bytes,
        ),
    )(xp, prepared.w13, prepared.w2t)

    if aligned:
        return out.reshape(orig_shape)
    return out[:M, :d_model].reshape(orig_shape)


def make_swiglu(w1, w2, w3, *, tm=None, tf=None, compute_dtype=jnp.bfloat16,
                vmem_limit_bytes=None):
    """Prepare the weight layout ONCE; returns a per-call callable f(x)."""
    gen, vmem_cap, _ = _chip_info()
    if vmem_limit_bytes is None:
        vmem_limit_bytes = _vmem_budget(vmem_cap)
    d_tm, d_tf = _GEN_TILES.get(gen, _GEN_TILES["unknown"])
    if tm is None:
        tm = d_tm
    if tf is None:
        tf = d_tf
    cbytes = jnp.dtype(compute_dtype).itemsize
    dff, d_model = w1.shape
    tf = _pick_tf(tf, tm, d_model, dff, cbytes, vmem_limit_bytes)
    prepared = prepare_swiglu_weights(w1, w2, w3, tf=tf,
                                      compute_dtype=compute_dtype)

    def apply(x):
        return swiglu(x, prepared=prepared, tm=tm, compute_dtype=compute_dtype,
                      vmem_limit_bytes=vmem_limit_bytes)

    return apply


def swiglu_ref(x, w1, w2, w3, compute_dtype=jnp.float32):
    """Pure-JAX reference (compute_dtype matmuls, f32 accumulation)."""
    xc = x.astype(compute_dtype)
    h1 = jnp.dot(xc, w1.T.astype(compute_dtype),
                 preferred_element_type=jnp.float32)
    h3 = jnp.dot(xc, w3.T.astype(compute_dtype),
                 preferred_element_type=jnp.float32)
    g = (h1 * jax.nn.sigmoid(h1)) * h3
    out = jnp.dot(g.astype(compute_dtype), w2.T.astype(compute_dtype),
                  preferred_element_type=jnp.float32)
    return out.astype(x.dtype)


if __name__ == "__main__":
    key = jax.random.PRNGKey(0)
    kx, k1, k2, k3, kx2, k4, k5, k6 = jax.random.split(key, 8)

    # ---- Test 1: module-sized tiny shapes (n_f == 1, f32 direct-output path) ----
    batch, seq, d_model, dff = 2, 8, 32, 64
    x = jax.random.normal(kx, (batch, seq, d_model), jnp.float32)
    # Deterministic synthetic parameter init (module's __init__ gives shapes).
    w1 = jax.random.normal(k1, (dff, d_model), jnp.float32) * 0.05
    w2 = jax.random.normal(k2, (d_model, dff), jnp.float32) * 0.05
    w3 = jax.random.normal(k3, (dff, d_model), jnp.float32) * 0.05

    swiglu_fn = make_swiglu(w1, w2, w3)         # weight layout prepared ONCE here
    out = jax.block_until_ready(swiglu_fn(x))
    assert out.shape == (batch, seq, d_model)

    ref_m = swiglu_ref(x, w1, w2, w3, compute_dtype=jnp.bfloat16)
    assert jnp.allclose(out, ref_m, atol=2e-3, rtol=2e-3), \
        float(jnp.max(jnp.abs(out - ref_m)))
    ref_f = swiglu_ref(x, w1, w2, w3, compute_dtype=jnp.float32)
    assert jnp.allclose(out, ref_f, atol=3e-2, rtol=3e-2), \
        float(jnp.max(jnp.abs(out - ref_f)))

    # ---- Test 2: multi-step dff reduction (n_f > 1), f32 direct-accumulate path ----
    d_model2, dff2, M2 = 128, 384, 128
    x2 = jax.random.normal(kx2, (M2, d_model2), jnp.float32)
    w1b = jax.random.normal(k4, (dff2, d_model2), jnp.float32) * 0.05
    w2b = jax.random.normal(k5, (d_model2, dff2), jnp.float32) * 0.05
    w3b = jax.random.normal(k6, (dff2, d_model2), jnp.float32) * 0.05
    out2 = jax.block_until_ready(swiglu(x2, w1b, w2b, w3b, tf=128))
    ref2 = swiglu_ref(x2, w1b, w2b, w3b, compute_dtype=jnp.bfloat16)
    assert jnp.allclose(out2, ref2, atol=5e-3, rtol=5e-3), \
        float(jnp.max(jnp.abs(out2 - ref2)))

    # ---- Test 3: bf16 input -> f32 VMEM accumulator + cast-on-finalize path ----
    x2b = x2.astype(jnp.bfloat16)
    out3 = jax.block_until_ready(swiglu(x2b, w1b, w2b, w3b, tf=128))
    assert out3.dtype == jnp.bfloat16
    ref3 = swiglu_ref(x2b, w1b, w2b, w3b, compute_dtype=jnp.bfloat16)
    assert jnp.allclose(out3.astype(jnp.float32), ref3.astype(jnp.float32),
                        atol=2e-2, rtol=2e-2), \
        float(jnp.max(jnp.abs(out3.astype(jnp.float32) - ref3.astype(jnp.float32))))

    print("KERNEL_OK")
</pallas_src>

<mosaic_0001>
module attributes {stable_mosaic.version = 11 : i64} {
  func.func @kernel(%arg0: i32, %arg1: i32, %arg2: memref<128x128xbf16, #tpu.memory_space<vmem>>, %arg3: memref<1x128x256xbf16, #tpu.memory_space<vmem>>, %arg4: memref<128x128xbf16, #tpu.memory_space<vmem>>, %arg5: memref<128x128xf32, #tpu.memory_space<vmem>>) attributes {dimension_semantics = [#tpu.dimension_semantics<parallel>, #tpu.dimension_semantics<arbitrary>], iteration_bounds = array<i64: 1, 1>, scalar_prefetch = 0 : i64, scratch_operands = 0 : i64, tpu.core_type = #tpu.core_type<tc>, window_params = [{transform_indices = @transform_0, window_bounds = array<i64: 128, 128>}, {transform_indices = @transform_1, window_bounds = array<i64: 1, 128, 256>}, {transform_indices = @transform_2, window_bounds = array<i64: 128, 128>}, {transform_indices = @transform_3, window_bounds = array<i64: 128, 128>}]} {
    %c0 = arith.constant 0 : index
    %c0_0 = arith.constant 0 : index
    %0 = vector.load %arg2[%c0, %c0_0] : memref<128x128xbf16, #tpu.memory_space<vmem>>, vector<128x128xbf16>
    %c0_1 = arith.constant 0 : index
    %c0_2 = arith.constant 0 : index
    %c0_3 = arith.constant 0 : index
    %1 = vector.load %arg3[%c0_1, %c0_2, %c0_3] : memref<1x128x256xbf16, #tpu.memory_space<vmem>>, vector<1x128x256xbf16>
    %2 = vector.shape_cast %1 : vector<1x128x256xbf16> to vector<128x256xbf16>
    %cst = arith.constant dense<0.000000e+00> : vector<128x256xf32>
    %3 = tpu.matmul %0, %2, %cst {dimension_numbers = #tpu.dot_dimension_numbers<[1], [0], [0], [1], [0, 0, 1, 1], [], []>} : vector<128x128xbf16>, vector<128x256xbf16>, vector<128x256xf32> -> vector<128x256xf32>
    %4 = vector.extract_strided_slice %3 {offsets = [0, 0], sizes = [128, 128], strides = [1, 1]} : vector<128x256xf32> to vector<128x128xf32>
    %5 = vector.extract_strided_slice %3 {offsets = [0, 128], sizes = [128, 128], strides = [1, 1]} : vector<128x256xf32> to vector<128x128xf32>
    %6 = arith.negf %4 : vector<128x128xf32>
    %7 = math.exp %6 : vector<128x128xf32>
    %cst_4 = arith.constant 1.000000e+00 : f32
    %8 = vector.broadcast %cst_4 : f32 to vector<128x128xf32>
    %9 = arith.addf %8, %7 : vector<128x128xf32>
    %10 = arith.divf %8, %9 : vector<128x128xf32>
    %11 = arith.mulf %4, %10 : vector<128x128xf32>
    %12 = arith.mulf %11, %5 : vector<128x128xf32>
    %13 = arith.truncf %12 : vector<128x128xf32> to vector<128x128xbf16>
    %c0_5 = arith.constant 0 : index
    %c0_6 = arith.constant 0 : index
    %14 = vector.load %arg4[%c0_5, %c0_6] : memref<128x128xbf16, #tpu.memory_space<vmem>>, vector<128x128xbf16>
    %cst_7 = arith.constant dense<0.000000e+00> : vector<128x128xf32>
    %15 = tpu.matmul %13, %14, %cst_7 {dimension_numbers = #tpu.dot_dimension_numbers<[1], [0], [0], [1], [0, 0, 1, 1], [], []>} : vector<128x128xbf16>, vector<128x128xbf16>, vector<128x128xf32> -> vector<128x128xf32>
    %c0_8 = arith.constant 0 : index
    %c0_9 = arith.constant 0 : index
    %16 = vector.load %arg5[%c0_8, %c0_9] : memref<128x128xf32, #tpu.memory_space<vmem>>, vector<128x128xf32>
    tpu.vector_store %arg5[%c0_8, %c0_9], %15 {strides = array<i32>} : memref<128x128xf32, #tpu.memory_space<vmem>>, vector<128x128xf32>,
    return
  }
  func.func @transform_0(%arg0: i32, %arg1: i32) -> (i32, i32) {
    %c0_i32 = arith.constant 0 : i32
    %c0_i32_0 = arith.constant 0 : i32
    return %arg0, %c0_i32 : i32, i32
  }
  func.func @transform_1(%arg0: i32, %arg1: i32) -> (i32, i32, i32) {
    %c0_i32 = arith.constant 0 : i32
    %c0_i32_0 = arith.constant 0 : i32
    %c0_i32_1 = arith.constant 0 : i32
    return %arg1, %c0_i32, %c0_i32_0 : i32, i32, i32
  }
  func.func @transform_2(%arg0: i32, %arg1: i32) -> (i32, i32) {
    %c0_i32 = arith.constant 0 : i32
    %c0_i32_0 = arith.constant 0 : i32
    return %arg1, %c0_i32 : i32, i32
  }
  func.func @transform_3(%arg0: i32, %arg1: i32) -> (i32, i32) {
    %c0_i32 = arith.constant 0 : i32
    %c0_i32_0 = arith.constant 0 : i32
    return %arg0, %c0_i32 : i32, i32
  }
}

</mosaic_0001>

<llo_original>
// kernel: tpu_custom_call.1
$region0: #{tpu_custom_call.1}
  #allocation0 [shape = 'u32[]', space=smem, size = 0x4, offset = 0x4, fixed_abs, tag = 'smem constant byte address 0x4 - core index']
  #allocation1 [shape = 'u32[144,128]{1,0:T(1,128)}', space=vmem, size = 0x12000, scoped, tag = 'internal scratch']
  %s0 = inlined_call_operand.hbm [shape: bf16[128,128], index: 0, kind: input, shape index: {}]
  %s1 = inlined_call_operand.hbm [shape: bf16[1,128,256], index: 1, kind: input, shape index: {}]
  %s2 = inlined_call_operand.hbm [shape: bf16[128,128], index: 2, kind: input, shape index: {}]
  %s3 = inlined_call_operand.hbm [shape: f32[128,128], index: 3, kind: output, shape index: {}]
  %s4 = sld [smem:[#allocation0]]
  $region34: #{tpu_custom_call.1} parent=0
    _
  %s6 = ssub.s32 1, %s4
  %s7 = scalar_select 0, %s6, %s4
  $region1: #{tpu_custom_call.1} parent=0
    #allocation2 [shape = 'u8[32768]{0}', space=vmem, size = 0x8000, scoped, tag = 'input window, operand 0, single buffered']
    #allocation3 [shape = 's32[1]{0}', space=sflag, size = 0x4, scoped, tag = 'scoped memory for tpu_custom_call.1']
    #allocation4 [shape = 's32[1]{0}', space=sflag, size = 0x4, scoped, tag = 'scoped memory for tpu_custom_call.1']
    #allocation5 [shape = 'u8[65536]{0}', space=vmem, size = 0x10000, scoped, tag = 'input window, operand 1, single buffered']
    #allocation6 [shape = 's32[1]{0}', space=sflag, size = 0x4, scoped, tag = 'scoped memory for tpu_custom_call.1']
    #allocation7 [shape = 'u8[32768]{0}', space=vmem, size = 0x8000, scoped, tag = 'input window, operand 2, single buffered']
    #allocation8 [shape = 'u8[65536]{0}', space=vmem, size = 0x10000, scoped, tag = 'output window, operand 0, single buffered']
    %8 = vsyncpa [#allocation3], 0
    %9 = vsyncpa [#allocation6], 0
    %10 = vsyncpa [#allocation4], 0
    // Predicated region
    $region2: #{tpu_custom_call.1} parent=1 // pred_check
      _
    $region3: #{tpu_custom_call.1} parent=1 // pred_check_branch
      %12 = sbr.rel (0) target = $region5
    $region4: #{tpu_custom_call.1} parent=1 // pred_region
      %s14 = ssub.s32 1024, 1024
      %15 = vsyncadd [#allocation3], %s14
      %s16 = sshll.u32 [#allocation2], 4
      %s17 = int_to_ptr.vmem [resolvable:$true] %s16
      %22 = dma.hbm_to_vmem [thread:$0]  %s0, 1024, %s17, [#allocation3], 64, 64, 4
    $region5: #{tpu_custom_call.1} parent=1 // pred_fallthru
      _
    // Predicated region
    $region6: #{tpu_custom_call.1} parent=1 // pred_check
      _
    $region7: #{tpu_custom_call.1} parent=1 // pred_check_branch
      %24 = sbr.rel (0) target = $region9
    $region8: #{tpu_custom_call.1} parent=1 // pred_region
      %s26 = ssub.s32 2048, 2048
      %27 = vsyncadd [#allocation6], %s26
      %s28 = sshll.u32 [#allocation5], 4
      %s29 = int_to_ptr.vmem [resolvable:$true] %s28
      %34 = dma.hbm_to_vmem [thread:$0]  %s1, 2048, %s29, [#allocation6], 128, 128, 8
    $region9: #{tpu_custom_call.1} parent=1 // pred_fallthru
      _
    // Predicated region
    $region10: #{tpu_custom_call.1} parent=1 // pred_check
      _
    $region11: #{tpu_custom_call.1} parent=1 // pred_check_branch
      %36 = sbr.rel (0) target = $region13
    $region12: #{tpu_custom_call.1} parent=1 // pred_region
      %s38 = ssub.s32 1024, 1024
      %39 = vsyncadd [#allocation6], %s38
      %s40 = sshll.u32 [#allocation7], 4
      %s41 = int_to_ptr.vmem [resolvable:$true] %s40
      %46 = dma.hbm_to_vmem [thread:$0]  %s2, 1024, %s41, [#allocation6], 64, 64, 4
    $region13: #{tpu_custom_call.1} parent=1 // pred_fallthru
      _
    // Predicated region
    $region14: #{tpu_custom_call.1} parent=1 // pred_check
      _
    $region15: #{tpu_custom_call.1} parent=1 // pred_check_branch
      %48 = sbr.rel (0) target = $region17
    $region16: #{tpu_custom_call.1} parent=1 // pred_region
      %49 = dma.done [#allocation3], 1024
    $region17: #{tpu_custom_call.1} parent=1 // pred_fallthru
      _
    // Predicated region
    $region18: #{tpu_custom_call.1} parent=1 // pred_check
      _
    $region19: #{tpu_custom_call.1} parent=1 // pred_check_branch
      %51 = sbr.rel (0) target = $region21
    $region20: #{tpu_custom_call.1} parent=1 // pred_region
      %52 = dma.done [#allocation6], 2048
    $region21: #{tpu_custom_call.1} parent=1 // pred_fallthru
      _
    // Predicated region
    $region22: #{tpu_custom_call.1} parent=1 // pred_check
      _
    $region23: #{tpu_custom_call.1} parent=1 // pred_check_branch
      %54 = sbr.rel (0) target = $region25
    $region24: #{tpu_custom_call.1} parent=1 // pred_region
      %55 = dma.done [#allocation6], 1024
    $region25: #{tpu_custom_call.1} parent=1 // pred_fallthru
      _
    %v57 = vld [vmem:[#allocation2] sm:$0xf]
    %v58 = vld [vmem:[#allocation2 + $0x4] sm:$0xf]
    %v59 = vld [vmem:[#allocation2 + $0x8] sm:$0xf]
    %v60 = vld [vmem:[#allocation2 + $0xc] sm:$0xf]
    %v61 = vld [vmem:[#allocation2 + $0x10] sm:$0xf]
    %v62 = vld [vmem:[#allocation2 + $0x14] sm:$0xf]
    %v63 = vld [vmem:[#allocation2 + $0x18] sm:$0xf]
    %v64 = vld [vmem:[#allocation2 + $0x1c] sm:$0xf]
    %v65 = vld [vmem:[#allocation2 + $0x20] sm:$0xf]
    %v66 = vld [vmem:[#allocation2 + $0x24] sm:$0xf]
    %v67 = vld [vmem:[#allocation2 + $0x28] sm:$0xf]
    %v68 = vld [vmem:[#allocation2 + $0x2c] sm:$0xf]
    %v69 = vld [vmem:[#allocation2 + $0x30] sm:$0xf]
    %v70 = vld [vmem:[#allocation2 + $0x34] sm:$0xf]
    %v71 = vld [vmem:[#allocation2 + $0x38] sm:$0xf]
    %v72 = vld [vmem:[#allocation2 + $0x3c] sm:$0xf]
    %v73 = vld [vmem:[#allocation5] sm:$0xff]
    %v74 = vld [vmem:[#allocation5 + $0x8] sm:$0xff]
    %v75 = vld [vmem:[#allocation5 + $0x10] sm:$0xff]
    %v76 = vld [vmem:[#allocation5 + $0x18] sm:$0xff]
    %v77 = vld [vmem:[#allocation5 + $0x20] sm:$0xff]
    %v78 = vld [vmem:[#allocation5 + $0x28] sm:$0xff]
    %v79 = vld [vmem:[#allocation5 + $0x30] sm:$0xff]
    %v80 = vld [vmem:[#allocation5 + $0x38] sm:$0xff]
    %v81 = vld [vmem:[#allocation5 + $0x40] sm:$0xff]
    %v82 = vld [vmem:[#allocation5 + $0x48] sm:$0xff]
    %v83 = vld [vmem:[#allocation5 + $0x50] sm:$0xff]
    %v84 = vld [vmem:[#allocation5 + $0x58] sm:$0xff]
    %v85 = vld [vmem:[#allocation5 + $0x60] sm:$0xff]
    %v86 = vld [vmem:[#allocation5 + $0x68] sm:$0xff]
    %v87 = vld [vmem:[#allocation5 + $0x70] sm:$0xff]
    %v88 = vld [vmem:[#allocation5 + $0x78] sm:$0xff]
    %v105 = vunpack.c.l.b16 %v57
    %v106 = vunpack.c.l.b16 %v58
    %v107 = vunpack.c.l.b16 %v59
    %v108 = vunpack.c.l.b16 %v60
    %v109 = vunpack.c.l.b16 %v61
    %v110 = vunpack.c.l.b16 %v62
    %v111 = vunpack.c.l.b16 %v63
    %v112 = vunpack.c.l.b16 %v64
    %v113 = vunpack.c.l.b16 %v65
    %v114 = vunpack.c.l.b16 %v66
    %v115 = vunpack.c.l.b16 %v67
    %v116 = vunpack.c.l.b16 %v68
    %v117 = vunpack.c.l.b16 %v69
    %v118 = vunpack.c.l.b16 %v70
    %v119 = vunpack.c.l.b16 %v71
    %v120 = vunpack.c.l.b16 %v72
    %v121 = vpack.c.b16 %v106, %v105
    %v122 = vpack.c.b16 %v108, %v107
    %v123 = vpack.c.b16 %v110, %v109
    %v124 = vpack.c.b16 %v112, %v111
    %v125 = vpack.c.b16 %v114, %v113
    %v126 = vpack.c.b16 %v116, %v115
    %v127 = vpack.c.b16 %v118, %v117
    %v128 = vpack.c.b16 %v120, %v119
    %v153 = vunpack.c.l.b16 %v73
    %v154 = vunpack.c.h.b16 %v73
    %v155 = vunpack.c.l.b16 %v74
    %v156 = vunpack.c.h.b16 %v74
    %v157 = vunpack.c.l.b16 %v75
    %v158 = vunpack.c.h.b16 %v75
    %v159 = vunpack.c.l.b16 %v76
    %v160 = vunpack.c.h.b16 %v76
    %v161 = vunpack.c.l.b16 %v77
    %v162 = vunpack.c.h.b16 %v77
    %v163 = vunpack.c.l.b16 %v78
    %v164 = vunpack.c.h.b16 %v78
    %v165 = vunpack.c.l.b16 %v79
    %v166 = vunpack.c.h.b16 %v79
    %v167 = vunpack.c.l.b16 %v80
    %v168 = vunpack.c.h.b16 %v80
    %v169 = vunpack.c.l.b16 %v81
    %v170 = vunpack.c.h.b16 %v81
    %v171 = vunpack.c.l.b16 %v82
    %v172 = vunpack.c.h.b16 %v82
    %v173 = vunpack.c.l.b16 %v83
    %v174 = vunpack.c.h.b16 %v83
    %v175 = vunpack.c.l.b16 %v84
    %v176 = vunpack.c.h.b16 %v84
    %v177 = vunpack.c.l.b16 %v85
    %v178 = vunpack.c.h.b16 %v85
    %v179 = vunpack.c.l.b16 %v86
    %v180 = vunpack.c.h.b16 %v86
    %v181 = vunpack.c.l.b16 %v87
    %v182 = vunpack.c.h.b16 %v87
    %v183 = vunpack.c.l.b16 %v88
    %v184 = vunpack.c.h.b16 %v88
    %v185 = vpack.c.b16 %v155, %v153
    %v186 = vpack.c.b16 %v156, %v154
    %v187 = vpack.c.b16 %v159, %v157
    %v188 = vpack.c.b16 %v160, %v158
    %v189 = vpack.c.b16 %v163, %v161
    %v190 = vpack.c.b16 %v164, %v162
    %v191 = vpack.c.b16 %v167, %v165
    %v192 = vpack.c.b16 %v168, %v166
    %v193 = vpack.c.b16 %v171, %v169
    %v194 = vpack.c.b16 %v172, %v170
    %v195 = vpack.c.b16 %v175, %v173
    %v196 = vpack.c.b16 %v176, %v174
    %v197 = vpack.c.b16 %v179, %v177
    %v198 = vpack.c.b16 %v180, %v178
    %v199 = vpack.c.b16 %v183, %v181
    %v200 = vpack.c.b16 %v184, %v182
    %217 = vmatprep.subr.bf16.mxu0 %v186
    %218 = vmatpush1.bf16.msra.mxu0 %v185
    %219 = vmatprep.subr.bf16.mxu0 %v188
    %220 = vmatpush1.bf16.msra.mxu0 %v187
    %221 = vmatprep.subr.bf16.mxu0 %v190
    %222 = vmatpush1.bf16.msra.mxu0 %v189
    %223 = vmatprep.subr.bf16.mxu0 %v192
    %224 = vmatpush1.bf16.msra.mxu0 %v191
    %225 = vmatprep.subr.bf16.mxu0 %v194
    %226 = vmatpush1.bf16.msra.mxu0 %v193
    %227 = vmatprep.subr.bf16.mxu0 %v196
    %228 = vmatpush1.bf16.msra.mxu0 %v195
    %229 = vmatprep.subr.bf16.mxu0 %v198
    %230 = vmatpush1.bf16.msra.mxu0 %v197
    %231 = vmatprep.subr.bf16.mxu0 %v200
    %232 = vmatpush1.bf16.msra.mxu0 %v199
    %233 = vmatprep.subr.bf16.mxu0 0
    %234 = vmatpush1.bf16.msra.mxu0 0
    %235 = vmatprep.subr.bf16.mxu0 0
    %236 = vmatpush1.bf16.msra.mxu0 0
    %237 = vmatprep.subr.bf16.mxu0 0
    %238 = vmatpush1.bf16.msra.mxu0 0
    %239 = vmatprep.subr.bf16.mxu0 0
    %240 = vmatpush1.bf16.msra.mxu0 0
    %241 = vmatprep.subr.bf16.mxu0 0
    %242 = vmatpush1.bf16.msra.mxu0 0
    %243 = vmatprep.subr.bf16.mxu0 0
    %244 = vmatpush1.bf16.msra.mxu0 0
    %245 = vmatprep.subr.bf16.mxu0 0
    %246 = vmatpush1.bf16.msra.mxu0 0
    %247 = vmatprep.subr.bf16.mxu0 0
    %248 = vmatpush1.bf16.msra.mxu0 0
    %249 = vmatprep.mubr.bf16.mxu0 0
    %250 = vmatmul.mubr.bf16.gmra.mrb[0].mxu0 %v121
    %v251 = vpop.f32.mrb[0].mxu0
    %v252 = vadd.f32 0.0, %v251
    %v253 = vpop.f32.mrb[0].mxu0
    %v254 = vadd.f32 0.0, %v253
    %v255 = vpop.f32.mrb[0].mxu0
    %v256 = vadd.f32 0.0, %v255
    %v257 = vpop.f32.mrb[0].mxu0
    %v258 = vadd.f32 0.0, %v257
    %259 = vmatprep.mubr.bf16.mxu0 0
    %260 = vmatmul.mubr.bf16.gmra.mrb[0].mxu0 %v122
    %v261 = vpop.f32.mrb[0].mxu0
    %v262 = vadd.f32 0.0, %v261
    %v263 = vpop.f32.mrb[0].mxu0
    %v264 = vadd.f32 0.0, %v263
    %v265 = vpop.f32.mrb[0].mxu0
    %v266 = vadd.f32 0.0, %v265
    %v267 = vpop.f32.mrb[0].mxu0
    %v268 = vadd.f32 0.0, %v267
    %269 = vmatprep.mubr.bf16.mxu0 0
    %270 = vmatmul.mubr.bf16.gmra.mrb[0].mxu0 %v123
    %v271 = vpop.f32.mrb[0].mxu0
    %v272 = vadd.f32 0.0, %v271
    %v273 = vpop.f32.mrb[0].mxu0
    %v274 = vadd.f32 0.0, %v273
    %v275 = vpop.f32.mrb[0].mxu0
    %v276 = vadd.f32 0.0, %v275
    %v277 = vpop.f32.mrb[0].mxu0
    %v278 = vadd.f32 0.0, %v277
    %279 = vmatprep.mubr.bf16.mxu0 0
    %280 = vmatmul.mubr.bf16.gmra.mrb[0].mxu0 %v124
    %v281 = vpop.f32.mrb[0].mxu0
    %v282 = vadd.f32 0.0, %v281
    %v283 = vpop.f32.mrb[0].mxu0
    %v284 = vadd.f32 0.0, %v283
    %v285 = vpop.f32.mrb[0].mxu0
    %v286 = vadd.f32 0.0, %v285
    %v287 = vpop.f32.mrb[0].mxu0
    %v288 = vadd.f32 0.0, %v287
    %289 = vmatprep.mubr.bf16.mxu0 0
    %290 = vmatmul.mubr.bf16.gmra.mrb[0].mxu0 %v125
    %v291 = vpop.f32.mrb[0].mxu0
    %v292 = vadd.f32 0.0, %v291
    %v293 = vpop.f32.mrb[0].mxu0
    %v294 = vadd.f32 0.0, %v293
    %v295 = vpop.f32.mrb[0].mxu0
    %v296 = vadd.f32 0.0, %v295
    %v297 = vpop.f32.mrb[0].mxu0
    %v298 = vadd.f32 0.0, %v297
    %299 = vmatprep.mubr.bf16.mxu0 0
    %300 = vmatmul.mubr.bf16.gmra.mrb[0].mxu0 %v126
    %v301 = vpop.f32.mrb[0].mxu0
    %v302 = vadd.f32 0.0, %v301
    %v303 = vpop.f32.mrb[0].mxu0
    %v304 = vadd.f32 0.0, %v303
    %v305 = vpop.f32.mrb[0].mxu0
    %v306 = vadd.f32 0.0, %v305
    %v307 = vpop.f32.mrb[0].mxu0
    %v308 = vadd.f32 0.0, %v307
    %309 = vmatprep.mubr.bf16.mxu0 0
    %310 = vmatmul.mubr.bf16.gmra.mrb[0].mxu0 %v127
    %v311 = vpop.f32.mrb[0].mxu0
    %v312 = vadd.f32 0.0, %v311
    %v313 = vpop.f32.mrb[0].mxu0
    %v314 = vadd.f32 0.0, %v313
    %v315 = vpop.f32.mrb[0].mxu0
    %v316 = vadd.f32 0.0, %v315
    %v317 = vpop.f32.mrb[0].mxu0
    %v318 = vadd.f32 0.0, %v317
    %319 = vmatprep.mubr.bf16.mxu0 0
    %320 = vmatmul.mubr.bf16.gmra.mrb[0].mxu0 %v128
    %v321 = vpop.f32.mrb[0].mxu0
    %v322 = vadd.f32 0.0, %v321
    %v323 = vpop.f32.mrb[0].mxu0
    %v324 = vadd.f32 0.0, %v323
    %v325 = vpop.f32.mrb[0].mxu0
    %v326 = vadd.f32 0.0, %v325
    %v327 = vpop.f32.mrb[0].mxu0
    %v328 = vadd.f32 0.0, %v327
    %329 = vdwg.mxu0
    %v330 = vxor.u32 %v252, 2147483648
    %v331 = vxor.u32 %v256, 2147483648
    %v332 = vxor.u32 %v262, 2147483648
    %v333 = vxor.u32 %v266, 2147483648
    %v334 = vxor.u32 %v272, 2147483648
    %v335 = vxor.u32 %v276, 2147483648
    %v336 = vxor.u32 %v282, 2147483648
    %v337 = vxor.u32 %v286, 2147483648
    %v338 = vxor.u32 %v292, 2147483648
    %v339 = vxor.u32 %v296, 2147483648
    %v340 = vxor.u32 %v302, 2147483648
    %v341 = vxor.u32 %v306, 2147483648
    %v342 = vxor.u32 %v312, 2147483648
    %v343 = vxor.u32 %v316, 2147483648
    %v344 = vxor.u32 %v322, 2147483648
    %v345 = vxor.u32 %v326, 2147483648
    %v346 = vmul.f32 %v330, 1.442695
    %v347 = vpow.pop %v346
    %v348 = vmul.f32 %v331, 1.442695
    %v349 = vpow.pop %v348
    %v350 = vmul.f32 %v332, 1.442695
    %v351 = vpow.pop %v350
    %v352 = vmul.f32 %v333, 1.442695
    %v353 = vpow.pop %v352
    %v354 = vmul.f32 %v334, 1.442695
    %v355 = vpow.pop %v354
    %v356 = vmul.f32 %v335, 1.442695
    %v357 = vpow.pop %v356
    %v358 = vmul.f32 %v336, 1.442695
    %v359 = vpow.pop %v358
    %v360 = vmul.f32 %v337, 1.442695
    %v361 = vpow.pop %v360
    %v362 = vmul.f32 %v338, 1.442695
    %v363 = vpow.pop %v362
    %v364 = vmul.f32 %v339, 1.442695
    %v365 = vpow.pop %v364
    %v366 = vmul.f32 %v340, 1.442695
    %v367 = vpow.pop %v366
    %v368 = vmul.f32 %v341, 1.442695
    %v369 = vpow.pop %v368
    %v370 = vmul.f32 %v342, 1.442695
    %v371 = vpow.pop %v370
    %v372 = vmul.f32 %v343, 1.442695
    %v373 = vpow.pop %v372
    %v374 = vmul.f32 %v344, 1.442695
    %v375 = vpow.pop %v374
    %v376 = vmul.f32 %v345, 1.442695
    %v377 = vpow.pop %v376
    %v378 = vadd.f32 %v347, 1.0
    %v379 = vadd.f32 %v349, 1.0
    %v380 = vadd.f32 %v351, 1.0
    %v381 = vadd.f32 %v353, 1.0
    %v382 = vadd.f32 %v355, 1.0
    %v383 = vadd.f32 %v357, 1.0
    %v384 = vadd.f32 %v359, 1.0
    %v385 = vadd.f32 %v361, 1.0
    %v386 = vadd.f32 %v363, 1.0
    %v387 = vadd.f32 %v365, 1.0
    %v388 = vadd.f32 %v367, 1.0
    %v389 = vadd.f32 %v369, 1.0
    %v390 = vadd.f32 %v371, 1.0
    %v391 = vadd.f32 %v373, 1.0
    %v392 = vadd.f32 %v375, 1.0
    %v393 = vadd.f32 %v377, 1.0
    %v394 = vrcp.pop %v378
    %v395 = vmul.f32 1.0, %v394
    %v396 = vrcp.pop %v379
    %v397 = vmul.f32 1.0, %v396
    %v398 = vrcp.pop %v380
    %v399 = vmul.f32 1.0, %v398
    %v400 = vrcp.pop %v381
    %v401 = vmul.f32 1.0, %v400
    %v402 = vrcp.pop %v382
    %v403 = vmul.f32 1.0, %v402
    %v404 = vrcp.pop %v383
    %v405 = vmul.f32 1.0, %v404
    %v406 = vrcp.pop %v384
    %v407 = vmul.f32 1.0, %v406
    %v408 = vrcp.pop %v385
    %v409 = vmul.f32 1.0, %v408
    %v410 = vrcp.pop %v386
    %v411 = vmul.f32 1.0, %v410
    %v412 = vrcp.pop %v387
    %v413 = vmul.f32 1.0, %v412
    %v414 = vrcp.pop %v388
    %v415 = vmul.f32 1.0, %v414
    %v416 = vrcp.pop %v389
    %v417 = vmul.f32 1.0, %v416
    %v418 = vrcp.pop %v390
    %v419 = vmul.f32 1.0, %v418
    %v420 = vrcp.pop %v391
    %v421 = vmul.f32 1.0, %v420
    %v422 = vrcp.pop %v392
    %v423 = vmul.f32 1.0, %v422
    %v424 = vrcp.pop %v393
    %v425 = vmul.f32 1.0, %v424
    %v426 = vmul.f32 %v252, %v395
    %v427 = vmul.f32 %v256, %v397
    %v428 = vmul.f32 %v262, %v399
    %v429 = vmul.f32 %v266, %v401
    %v430 = vmul.f32 %v272, %v403
    %v431 = vmul.f32 %v276, %v405
    %v432 = vmul.f32 %v282, %v407
    %v433 = vmul.f32 %v286, %v409
    %v434 = vmul.f32 %v292, %v411
    %v435 = vmul.f32 %v296, %v413
    %v436 = vmul.f32 %v302, %v415
    %v437 = vmul.f32 %v306, %v417
    %v438 = vmul.f32 %v312, %v419
    %v439 = vmul.f32 %v316, %v421
    %v440 = vmul.f32 %v322, %v423
    %v441 = vmul.f32 %v326, %v425
    %v442 = vmul.f32 %v426, %v254
    %v443 = vmul.f32 %v427, %v258
    %v444 = vmul.f32 %v428, %v264
    %v445 = vmul.f32 %v429, %v268
    %v446 = vmul.f32 %v430, %v274
    %v447 = vmul.f32 %v431, %v278
    %v448 = vmul.f32 %v432, %v284
    %v449 = vmul.f32 %v433, %v288
    %v450 = vmul.f32 %v434, %v294
    %v451 = vmul.f32 %v435, %v298
    %v452 = vmul.f32 %v436, %v304
    %v453 = vmul.f32 %v437, %v308
    %v454 = vmul.f32 %v438, %v314
    %v455 = vmul.f32 %v439, %v318
    %v456 = vmul.f32 %v440, %v324
    %v457 = vmul.f32 %v441, %v328
    %v458 = vpack.c.bf16 %v443, %v442
    %v459 = vpack.c.bf16 %v445, %v444
    %v460 = vpack.c.bf16 %v447, %v446
    %v461 = vpack.c.bf16 %v449, %v448
    %v462 = vpack.c.bf16 %v451, %v450
    %v463 = vpack.c.bf16 %v453, %v452
    %v464 = vpack.c.bf16 %v455, %v454
    %v465 = vpack.c.bf16 %v457, %v456
    %v466 = vld [vmem:[#allocation7] sm:$0xf]
    %v467 = vld [vmem:[#allocation7 + $0x4] sm:$0xf]
    %v468 = vld [vmem:[#allocation7 + $0x8] sm:$0xf]
    %v469 = vld [vmem:[#allocation7 + $0xc] sm:$0xf]
    %v470 = vld [vmem:[#allocation7 + $0x10] sm:$0xf]
    %v471 = vld [vmem:[#allocation7 + $0x14] sm:$0xf]
    %v472 = vld [vmem:[#allocation7 + $0x18] sm:$0xf]
    %v473 = vld [vmem:[#allocation7 + $0x1c] sm:$0xf]
    %v474 = vld [vmem:[#allocation7 + $0x20] sm:$0xf]
    %v475 = vld [vmem:[#allocation7 + $0x24] sm:$0xf]
    %v476 = vld [vmem:[#allocation7 + $0x28] sm:$0xf]
    %v477 = vld [vmem:[#allocation7 + $0x2c] sm:$0xf]
    %v478 = vld [vmem:[#allocation7 + $0x30] sm:$0xf]
    %v479 = vld [vmem:[#allocation7 + $0x34] sm:$0xf]
    %v480 = vld [vmem:[#allocation7 + $0x38] sm:$0xf]
    %v481 = vld [vmem:[#allocation7 + $0x3c] sm:$0xf]
    %v498 = vunpack.c.l.b16 %v466
    %v499 = vunpack.c.l.b16 %v467
    %v500 = vunpack.c.l.b16 %v468
    %v501 = vunpack.c.l.b16 %v469
    %v502 = vunpack.c.l.b16 %v470
    %v503 = vunpack.c.l.b16 %v471
    %v504 = vunpack.c.l.b16 %v472
    %v505 = vunpack.c.l.b16 %v473
    %v506 = vunpack.c.l.b16 %v474
    %v507 = vunpack.c.l.b16 %v475
    %v508 = vunpack.c.l.b16 %v476
    %v509 = vunpack.c.l.b16 %v477
    %v510 = vunpack.c.l.b16 %v478
    %v511 = vunpack.c.l.b16 %v479
    %v512 = vunpack.c.l.b16 %v480
    %v513 = vunpack.c.l.b16 %v481
    %v514 = vpack.c.b16 %v499, %v498
    %v515 = vpack.c.b16 %v501, %v500
    %v516 = vpack.c.b16 %v503, %v502
    %v517 = vpack.c.b16 %v505, %v504
    %v518 = vpack.c.b16 %v507, %v506
    %v519 = vpack.c.b16 %v509, %v508
    %v520 = vpack.c.b16 %v511, %v510
    %v521 = vpack.c.b16 %v513, %v512
    %530 = vmatprep.subr.bf16.mxu0 0
    %531 = vmatpush1.bf16.msra.mxu0 %v514
    %532 = vmatprep.subr.bf16.mxu0 0
    %533 = vmatpush1.bf16.msra.mxu0 %v515
    %534 = vmatprep.subr.bf16.mxu0 0
    %535 = vmatpush1.bf16.msra.mxu0 %v516
    %536 = vmatprep.subr.bf16.mxu0 0
    %537 = vmatpush1.bf16.msra.mxu0 %v517
    %538 = vmatprep.subr.bf16.mxu0 0
    %539 = vmatpush1.bf16.msra.mxu0 %v518
    %540 = vmatprep.subr.bf16.mxu0 0
    %541 = vmatpush1.bf16.msra.mxu0 %v519
    %542 = vmatprep.subr.bf16.mxu0 0
    %543 = vmatpush1.bf16.msra.mxu0 %v520
    %544 = vmatprep.subr.bf16.mxu0 0
    %545 = vmatpush1.bf16.msra.mxu0 %v521
    %546 = vmatprep.subr.bf16.mxu0 0
    %547 = vmatpush1.bf16.msra.mxu0 0
    %548 = vmatprep.subr.bf16.mxu0 0
    %549 = vmatpush1.bf16.msra.mxu0 0
    %550 = vmatprep.subr.bf16.mxu0 0
    %551 = vmatpush1.bf16.msra.mxu0 0
    %552 = vmatprep.subr.bf16.mxu0 0
    %553 = vmatpush1.bf16.msra.mxu0 0
    %554 = vmatprep.subr.bf16.mxu0 0
    %555 = vmatpush1.bf16.msra.mxu0 0
    %556 = vmatprep.subr.bf16.mxu0 0
    %557 = vmatpush1.bf16.msra.mxu0 0
    %558 = vmatprep.subr.bf16.mxu0 0
    %559 = vmatpush1.bf16.msra.mxu0 0
    %560 = vmatprep.subr.bf16.mxu0 0
    %561 = vmatpush1.bf16.msra.mxu0 0
    %562 = vmatprep.mubr.bf16.mxu0 0
    %563 = vmatmul.mubr.bf16.gmra.mrb[0].mxu0 %v458
    %v564 = vpop.f32.mrb[0].mxu0
    %v565 = vadd.f32 0.0, %v564
    %v566 = vpop.f32.mrb[0].mxu0
    %v567 = vpop.f32.mrb[0].mxu0
    %v568 = vadd.f32 0.0, %v567
    %v569 = vpop.f32.mrb[0].mxu0
    %570 = vmatprep.mubr.bf16.mxu0 0
    %571 = vmatmul.mubr.bf16.gmra.mrb[0].mxu0 %v459
    %v572 = vpop.f32.mrb[0].mxu0
    %v573 = vadd.f32 0.0, %v572
    %v574 = vpop.f32.mrb[0].mxu0
    %v575 = vpop.f32.mrb[0].mxu0
    %v576 = vadd.f32 0.0, %v575
    %v577 = vpop.f32.mrb[0].mxu0
    %578 = vmatprep.mubr.bf16.mxu0 0
    %579 = vmatmul.mubr.bf16.gmra.mrb[0].mxu0 %v460
    %v580 = vpop.f32.mrb[0].mxu0
    %v581 = vadd.f32 0.0, %v580
    %v582 = vpop.f32.mrb[0].mxu0
    %v583 = vpop.f32.mrb[0].mxu0
    %v584 = vadd.f32 0.0, %v583
    %v585 = vpop.f32.mrb[0].mxu0
    %586 = vmatprep.mubr.bf16.mxu0 0
    %587 = vmatmul.mubr.bf16.gmra.mrb[0].mxu0 %v461
    %v588 = vpop.f32.mrb[0].mxu0
    %v589 = vadd.f32 0.0, %v588
    %v590 = vpop.f32.mrb[0].mxu0
    %v591 = vpop.f32.mrb[0].mxu0
    %v592 = vadd.f32 0.0, %v591
    %v593 = vpop.f32.mrb[0].mxu0
    %594 = vmatprep.mubr.bf16.mxu0 0
    %595 = vmatmul.mubr.bf16.gmra.mrb[0].mxu0 %v462
    %v596 = vpop.f32.mrb[0].mxu0
    %v597 = vadd.f32 0.0, %v596
    %v598 = vpop.f32.mrb[0].mxu0
    %v599 = vpop.f32.mrb[0].mxu0
    %v600 = vadd.f32 0.0, %v599
    %v601 = vpop.f32.mrb[0].mxu0
    %602 = vmatprep.mubr.bf16.mxu0 0
    %603 = vmatmul.mubr.bf16.gmra.mrb[0].mxu0 %v463
    %v604 = vpop.f32.mrb[0].mxu0
    %v605 = vadd.f32 0.0, %v604
    %v606 = vpop.f32.mrb[0].mxu0
    %v607 = vpop.f32.mrb[0].mxu0
    %v608 = vadd.f32 0.0, %v607
    %v609 = vpop.f32.mrb[0].mxu0
    %610 = vmatprep.mubr.bf16.mxu0 0
    %611 = vmatmul.mubr.bf16.gmra.mrb[0].mxu0 %v464
    %v612 = vpop.f32.mrb[0].mxu0
    %v613 = vadd.f32 0.0, %v612
    %v614 = vpop.f32.mrb[0].mxu0
    %v615 = vpop.f32.mrb[0].mxu0
    %v616 = vadd.f32 0.0, %v615
    %v617 = vpop.f32.mrb[0].mxu0
    %618 = vmatprep.mubr.bf16.mxu0 0
    %619 = vmatmul.mubr.bf16.gmra.mrb[0].mxu0 %v465
    %v620 = vpop.f32.mrb[0].mxu0
    %v621 = vadd.f32 0.0, %v620
    %v622 = vpop.f32.mrb[0].mxu0
    %v623 = vpop.f32.mrb[0].mxu0
    %v624 = vadd.f32 0.0, %v623
    %v625 = vpop.f32.mrb[0].mxu0
    %626 = vdwg.mxu0
    %627 = vst [vmem:[#allocation8] sm:$0xff] %v565
    %628 = vst [vmem:[#allocation8 + $0x8] sm:$0xff] %v568
    %629 = vst [vmem:[#allocation8 + $0x10] sm:$0xff] %v573
    %630 = vst [vmem:[#allocation8 + $0x18] sm:$0xff] %v576
    %631 = vst [vmem:[#allocation8 + $0x20] sm:$0xff] %v581
    %632 = vst [vmem:[#allocation8 + $0x28] sm:$0xff] %v584
    %633 = vst [vmem:[#allocation8 + $0x30] sm:$0xff] %v589
    %634 = vst [vmem:[#allocation8 + $0x38] sm:$0xff] %v592
    %635 = vst [vmem:[#allocation8 + $0x40] sm:$0xff] %v597
    %636 = vst [vmem:[#allocation8 + $0x48] sm:$0xff] %v600
    %637 = vst [vmem:[#allocation8 + $0x50] sm:$0xff] %v605
    %638 = vst [vmem:[#allocation8 + $0x58] sm:$0xff] %v608
    %639 = vst [vmem:[#allocation8 + $0x60] sm:$0xff] %v613
    %640 = vst [vmem:[#allocation8 + $0x68] sm:$0xff] %v616
    %641 = vst [vmem:[#allocation8 + $0x70] sm:$0xff] %v621
    %642 = vst [vmem:[#allocation8 + $0x78] sm:$0xff] %v624
    // Predicated region
    $region26: #{tpu_custom_call.1} parent=1 // pred_check
      _
    $region27: #{tpu_custom_call.1} parent=1 // pred_check_branch
      %644 = sbr.rel (0) target = $region29
    $region28: #{tpu_custom_call.1} parent=1 // pred_region
      %s646 = ssub.s32 2048, 2048
      %647 = vsyncadd [#allocation4], %s646
      %s648 = sshll.u32 [#allocation8], 4
      %s649 = int_to_ptr.vmem [resolvable:$true] %s648
      %654 = dma.vmem_to_hbm [thread:$0]  %s649, 2048, %s3, [#allocation4], 128, 128, 8
    $region29: #{tpu_custom_call.1} parent=1 // pred_fallthru
      _
    // Predicated region
    $region30: #{tpu_custom_call.1} parent=1 // pred_check
      _
    $region31: #{tpu_custom_call.1} parent=1 // pred_check_branch
      %656 = sbr.rel (0) target = $region33
    $region32: #{tpu_custom_call.1} parent=1 // pred_region
      %657 = dma.done [#allocation4], 2048
    $region33: #{tpu_custom_call.1} parent=1 // pred_fallthru
      _
    %658 = vsyncpa [#allocation3], 1
    %659 = vsyncpa [#allocation6], 1
    %660 = vsyncpa [#allocation4], 1

</llo_original>
